<compile_context>
chip_gen: v5e
topology: v5e:2x2
jax: 0.10.0
libtpu: 0.0.40
codegen_flags: <defaults>
</compile_context>

<pallas_src>
import functools

import jax
import jax.numpy as jnp
from jax.experimental import pallas as pl
from jax.experimental.pallas import tpu as pltpu

_LANE = 128
_SUBLANE = 8
_MAX_TILE_R = 1024  # 1024 rows x 128 lanes = 128K batch elems per tile
                    # -> ~10.5 MB double-buffered working set (fits 16 MiB v5e /
                    #    32 MiB v6e/v7x default scoped VMEM)


def _dynamics_kernel(state_ref, ctrl_ref, out_ref, *, dt, dt_over_l):
    """Kinematic bicycle step on one dense batch tile.

    state_ref : VMEM (4, TILE_R, 128)  leading dim -> (x, y, yaw, v)
    ctrl_ref  : VMEM (2, TILE_R, 128)  leading dim -> (accel, steer)
    out_ref   : VMEM (4, TILE_R, 128)
    Each feature slab is a dense (TILE_R, 128) tile: full lane+sublane density,
    unmasked lane-dense stores.
    """
    x = state_ref[0]
    y = state_ref[1]
    yaw = state_ref[2]
    v = state_ref[3]
    accel = ctrl_ref[0]
    steer = ctrl_ref[1]

    out_ref[0] = x + v * jnp.cos(yaw) * dt
    out_ref[1] = y + v * jnp.sin(yaw) * dt
    # jnp.tan kept as-is: EUP-slot work, and exact enough for the 1e-5 check.
    out_ref[2] = yaw + v * jnp.tan(steer) * dt_over_l
    out_ref[3] = v + accel * dt


def _choose_tiling(r_total):
    """Pick (tile_r, num_tiles); tile_r is full-extent or a multiple of 8."""
    if r_total < 2 * _SUBLANE:
        return r_total, 1  # single full-extent block (no sublane padding rules)
    # >= 2 tiles whenever there is enough work so the "parallel" grid axis can
    # shard across both v7x TensorCores; each tile capped at _MAX_TILE_R rows.
    target_tiles = max(2, pl.cdiv(r_total, _MAX_TILE_R))
    tile_r = pl.cdiv(r_total, target_tiles)
    tile_r = min(((tile_r + _SUBLANE - 1) // _SUBLANE) * _SUBLANE, _MAX_TILE_R)
    return tile_r, pl.cdiv(r_total, tile_r)


def vehicle_dynamics_step_fm(state_fm, ctrl_fm, params, dt):
    """Feature-major single dynamics step (the fast-path kernel ABI).

    state_fm : (4, B) float32, rows (x, y, yaw, v)
    ctrl_fm  : (2, B) float32, rows (accel, steer)
    returns  : (4, B) float32 next state

    Callers that keep state feature-major (e.g. an MPC rollout) should call this
    directly and avoid any per-step transposes.
    """
    state_dim, B = state_fm.shape
    control_dim, _ = ctrl_fm.shape

    wheelbase = float(params["wheelbase"])
    dt_f = float(dt)
    dt_over_l = dt_f / wheelbase  # fold the divide at trace time
    # TODO(synk): if dt / wheelbase ever need to be traced values (vary under
    #             jit), route them through SMEM scalar prefetch instead of
    #             closure constants.

    r_total = pl.cdiv(B, _LANE)
    tile_r, num_tiles = _choose_tiling(r_total)
    r_pad = num_tiles * tile_r
    b_pad = r_pad * _LANE

    state_fm = state_fm.astype(jnp.float32)
    ctrl_fm = ctrl_fm.astype(jnp.float32)
    if b_pad != B:
        # Zero fill: tan(0)=0, cos(0)=1 -> no NaNs in the pad; sliced off below.
        state_fm = jnp.pad(state_fm, ((0, 0), (0, b_pad - B)))
        ctrl_fm = jnp.pad(ctrl_fm, ((0, 0), (0, b_pad - B)))

    # Free row-major reshape: batch -> (rows, 128 lanes), fully dense vregs.
    state_3d = state_fm.reshape(state_dim, r_pad, _LANE)
    ctrl_3d = ctrl_fm.reshape(control_dim, r_pad, _LANE)

    kernel = functools.partial(_dynamics_kernel, dt=dt_f, dt_over_l=dt_over_l)

    out_3d = pl.pallas_call(
        kernel,
        out_shape=jax.ShapeDtypeStruct((state_dim, r_pad, _LANE), jnp.float32),
        grid=(num_tiles,),
        in_specs=[
            pl.BlockSpec((state_dim, tile_r, _LANE), lambda i: (0, i, 0)),
            pl.BlockSpec((control_dim, tile_r, _LANE), lambda i: (0, i, 0)),
        ],
        out_specs=pl.BlockSpec((state_dim, tile_r, _LANE), lambda i: (0, i, 0)),
        compiler_params=pltpu.CompilerParams(
            dimension_semantics=("parallel",),
        ),
    )(state_3d, ctrl_3d)

    out_fm = out_3d.reshape(state_dim, b_pad)
    if b_pad != B:
        out_fm = out_fm[:, :B]
    return out_fm


def vehicle_dynamics_network(current_state, control_input, params, dt):
    """nn.Module-compatible forward: (B, 4), (B, 2) -> (B, 4).

    Thin compatibility shim over the feature-major kernel; the only extra work
    is the two transposes the PyTorch batch-major ABI forces.
    """
    out_fm = vehicle_dynamics_step_fm(current_state.T, control_input.T, params, dt)
    return out_fm.T.astype(current_state.dtype)


def _reference(current_state, control_input, params, dt):
    x, y, yaw, v = (current_state[:, i] for i in range(4))
    accel, steer = control_input[:, 0], control_input[:, 1]
    L = params["wheelbase"]
    return jnp.stack(
        [
            x + v * jnp.cos(yaw) * dt,
            y + v * jnp.sin(yaw) * dt,
            yaw + (v / L) * jnp.tan(steer) * dt,
            v + accel * dt,
        ],
        axis=-1,
    )


if __name__ == "__main__":
    key = jax.random.PRNGKey(0)

    STATE_DIM, CONTROL_DIM = 4, 2
    DT = 0.1
    PARAMS = {"wheelbase": 2.5}  # deterministic "module parameters"

    # B=8    : single tiny full-extent block (module's expected small usage)
    # B=300  : non-multiple-of-128 batch, single full-extent block (r=3)
    # B=2500 : exercises padding + a 2-tile "parallel" grid (v7x 2-TC path)
    for B in (8, 300, 2500):
        key, k1, k2 = jax.random.split(key, 3)
        current_state = jax.random.normal(k1, (B, STATE_DIM), dtype=jnp.float32)
        control_input = 0.3 * jax.random.normal(k2, (B, CONTROL_DIM), dtype=jnp.float32)

        next_state = vehicle_dynamics_network(current_state, control_input, PARAMS, DT)
        next_state = jax.block_until_ready(next_state)
        ref = _reference(current_state, control_input, PARAMS, DT)

        assert next_state.shape == (B, STATE_DIM)
        assert jnp.allclose(next_state, ref, atol=1e-5, rtol=1e-5), f"mismatch at B={B}"

    print("KERNEL_OK")
</pallas_src>

<mosaic_0001>
module attributes {stable_mosaic.version = 11 : i64} {
  func.func @_dynamics_kernel(%arg0: i32, %arg1: memref<4x1x128xf32, #tpu.memory_space<vmem>>, %arg2: memref<2x1x128xf32, #tpu.memory_space<vmem>>, %arg3: memref<4x1x128xf32, #tpu.memory_space<vmem>>) attributes {dimension_semantics = [#tpu.dimension_semantics<parallel>], iteration_bounds = array<i64: 1>, scalar_prefetch = 0 : i64, scratch_operands = 0 : i64, tpu.core_type = #tpu.core_type<tc>, window_params = [{transform_indices = @transform_0, window_bounds = array<i64: 4, 1, 128>}, {transform_indices = @transform_1, window_bounds = array<i64: 2, 1, 128>}, {transform_indices = @transform_2, window_bounds = array<i64: 4, 1, 128>}]} {
    %c0 = arith.constant 0 : index
    %c0_0 = arith.constant 0 : index
    %c0_1 = arith.constant 0 : index
    %0 = vector.load %arg1[%c0, %c0_0, %c0_1] : memref<4x1x128xf32, #tpu.memory_space<vmem>>, vector<1x1x128xf32>
    %1 = vector.shape_cast %0 : vector<1x1x128xf32> to vector<1x128xf32>
    %c1 = arith.constant 1 : index
    %c0_2 = arith.constant 0 : index
    %c0_3 = arith.constant 0 : index
    %2 = vector.load %arg1[%c1, %c0_2, %c0_3] : memref<4x1x128xf32, #tpu.memory_space<vmem>>, vector<1x1x128xf32>
    %3 = vector.shape_cast %2 : vector<1x1x128xf32> to vector<1x128xf32>
    %c2 = arith.constant 2 : index
    %c0_4 = arith.constant 0 : index
    %c0_5 = arith.constant 0 : index
    %4 = vector.load %arg1[%c2, %c0_4, %c0_5] : memref<4x1x128xf32, #tpu.memory_space<vmem>>, vector<1x1x128xf32>
    %5 = vector.shape_cast %4 : vector<1x1x128xf32> to vector<1x128xf32>
    %c3 = arith.constant 3 : index
    %c0_6 = arith.constant 0 : index
    %c0_7 = arith.constant 0 : index
    %6 = vector.load %arg1[%c3, %c0_6, %c0_7] : memref<4x1x128xf32, #tpu.memory_space<vmem>>, vector<1x1x128xf32>
    %7 = vector.shape_cast %6 : vector<1x1x128xf32> to vector<1x128xf32>
    %c0_8 = arith.constant 0 : index
    %c0_9 = arith.constant 0 : index
    %c0_10 = arith.constant 0 : index
    %8 = vector.load %arg2[%c0_8, %c0_9, %c0_10] : memref<2x1x128xf32, #tpu.memory_space<vmem>>, vector<1x1x128xf32>
    %9 = vector.shape_cast %8 : vector<1x1x128xf32> to vector<1x128xf32>
    %c1_11 = arith.constant 1 : index
    %c0_12 = arith.constant 0 : index
    %c0_13 = arith.constant 0 : index
    %10 = vector.load %arg2[%c1_11, %c0_12, %c0_13] : memref<2x1x128xf32, #tpu.memory_space<vmem>>, vector<1x1x128xf32>
    %11 = vector.shape_cast %10 : vector<1x1x128xf32> to vector<1x128xf32>
    %12 = math.cos %5 : vector<1x128xf32>
    %13 = arith.mulf %7, %12 : vector<1x128xf32>
    %cst = arith.constant 1.000000e-01 : f32
    %14 = vector.broadcast %cst : f32 to vector<1x128xf32>
    %15 = arith.mulf %13, %14 : vector<1x128xf32>
    %16 = arith.addf %1, %15 : vector<1x128xf32>
    %c0_14 = arith.constant 0 : index
    %c0_15 = arith.constant 0 : index
    %c0_16 = arith.constant 0 : index
    %17 = vector.load %arg3[%c0_14, %c0_15, %c0_16] : memref<4x1x128xf32, #tpu.memory_space<vmem>>, vector<1x1x128xf32>
    %18 = vector.shape_cast %17 : vector<1x1x128xf32> to vector<1x128xf32>
    %19 = vector.shape_cast %16 : vector<1x128xf32> to vector<1x1x128xf32>
    tpu.vector_store %arg3[%c0_14, %c0_15, %c0_16], %19 {strides = array<i32>} : memref<4x1x128xf32, #tpu.memory_space<vmem>>, vector<1x1x128xf32>,
    %20 = math.sin %5 : vector<1x128xf32>
    %21 = arith.mulf %7, %20 : vector<1x128xf32>
    %cst_17 = arith.constant 1.000000e-01 : f32
    %22 = vector.broadcast %cst_17 : f32 to vector<1x128xf32>
    %23 = arith.mulf %21, %22 : vector<1x128xf32>
    %24 = arith.addf %3, %23 : vector<1x128xf32>
    %c1_18 = arith.constant 1 : index
    %c0_19 = arith.constant 0 : index
    %c0_20 = arith.constant 0 : index
    %25 = vector.load %arg3[%c1_18, %c0_19, %c0_20] : memref<4x1x128xf32, #tpu.memory_space<vmem>>, vector<1x1x128xf32>
    %26 = vector.shape_cast %25 : vector<1x1x128xf32> to vector<1x128xf32>
    %27 = vector.shape_cast %24 : vector<1x128xf32> to vector<1x1x128xf32>
    tpu.vector_store %arg3[%c1_18, %c0_19, %c0_20], %27 {strides = array<i32>} : memref<4x1x128xf32, #tpu.memory_space<vmem>>, vector<1x1x128xf32>,
    %28 = math.tan %11 : vector<1x128xf32>
    %29 = arith.mulf %7, %28 : vector<1x128xf32>
    %cst_21 = arith.constant 4.000000e-02 : f32
    %30 = vector.broadcast %cst_21 : f32 to vector<1x128xf32>
    %31 = arith.mulf %29, %30 : vector<1x128xf32>
    %32 = arith.addf %5, %31 : vector<1x128xf32>
    %c2_22 = arith.constant 2 : index
    %c0_23 = arith.constant 0 : index
    %c0_24 = arith.constant 0 : index
    %33 = vector.load %arg3[%c2_22, %c0_23, %c0_24] : memref<4x1x128xf32, #tpu.memory_space<vmem>>, vector<1x1x128xf32>
    %34 = vector.shape_cast %33 : vector<1x1x128xf32> to vector<1x128xf32>
    %35 = vector.shape_cast %32 : vector<1x128xf32> to vector<1x1x128xf32>
    tpu.vector_store %arg3[%c2_22, %c0_23, %c0_24], %35 {strides = array<i32>} : memref<4x1x128xf32, #tpu.memory_space<vmem>>, vector<1x1x128xf32>,
    %cst_25 = arith.constant 1.000000e-01 : f32
    %36 = vector.broadcast %cst_25 : f32 to vector<1x128xf32>
    %37 = arith.mulf %9, %36 : vector<1x128xf32>
    %38 = arith.addf %7, %37 : vector<1x128xf32>
    %c3_26 = arith.constant 3 : index
    %c0_27 = arith.constant 0 : index
    %c0_28 = arith.constant 0 : index
    %39 = vector.load %arg3[%c3_26, %c0_27, %c0_28] : memref<4x1x128xf32, #tpu.memory_space<vmem>>, vector<1x1x128xf32>
    %40 = vector.shape_cast %39 : vector<1x1x128xf32> to vector<1x128xf32>
    %41 = vector.shape_cast %38 : vector<1x128xf32> to vector<1x1x128xf32>
    tpu.vector_store %arg3[%c3_26, %c0_27, %c0_28], %41 {strides = array<i32>} : memref<4x1x128xf32, #tpu.memory_space<vmem>>, vector<1x1x128xf32>,
    return
  }
  func.func @transform_0(%arg0: i32) -> (i32, i32, i32) {
    %c0_i32 = arith.constant 0 : i32
    %c0_i32_0 = arith.constant 0 : i32
    %c0_i32_1 = arith.constant 0 : i32
    return %c0_i32, %arg0, %c0_i32_0 : i32, i32, i32
  }
  func.func @transform_1(%arg0: i32) -> (i32, i32, i32) {
    %c0_i32 = arith.constant 0 : i32
    %c0_i32_0 = arith.constant 0 : i32
    %c0_i32_1 = arith.constant 0 : i32
    return %c0_i32, %arg0, %c0_i32_0 : i32, i32, i32
  }
  func.func @transform_2(%arg0: i32) -> (i32, i32, i32) {
    %c0_i32 = arith.constant 0 : i32
    %c0_i32_0 = arith.constant 0 : i32
    %c0_i32_1 = arith.constant 0 : i32
    return %c0_i32, %arg0, %c0_i32_0 : i32, i32, i32
  }
}

</mosaic_0001>

<llo_original>
// kernel: tpu_custom_call.1
$region0: #{tpu_custom_call.1}
  #allocation0 [shape = 'u32[]', space=smem, size = 0x4, offset = 0x4, fixed_abs, tag = 'smem constant byte address 0x4 - core index']
  #allocation1 [shape = 'u32[72,128]{1,0:T(1,128)}', space=vmem, size = 0x9000, scoped, tag = 'internal scratch']
  %s0 = inlined_call_operand.hbm [shape: f32[4,1,128], index: 0, kind: input, shape index: {}]
  %s1 = inlined_call_operand.hbm [shape: f32[2,1,128], index: 1, kind: input, shape index: {}]
  %s2 = inlined_call_operand.hbm [shape: f32[4,1,128], index: 2, kind: output, shape index: {}]
  %s3 = sld [smem:[#allocation0]]
  $region26: #{tpu_custom_call.1} parent=0
    _
  %s5 = ssub.s32 1, %s3
  %s6 = scalar_select 0, %s5, %s3
  $region1: #{tpu_custom_call.1} parent=0
    #allocation2 [shape = 'u8[2048]{0}', space=vmem, size = 0x800, scoped, tag = 'input window, operand 0, single buffered']
    #allocation3 [shape = 's32[1]{0}', space=sflag, size = 0x4, scoped, tag = 'scoped memory for tpu_custom_call.1']
    #allocation4 [shape = 's32[1]{0}', space=sflag, size = 0x4, scoped, tag = 'scoped memory for tpu_custom_call.1']
    #allocation5 [shape = 'u8[1024]{0}', space=vmem, size = 0x400, scoped, tag = 'input window, operand 1, single buffered']
    #allocation6 [shape = 's32[1]{0}', space=sflag, size = 0x4, scoped, tag = 'scoped memory for tpu_custom_call.1']
    #allocation7 [shape = 'u8[2048]{0}', space=vmem, size = 0x800, scoped, tag = 'output window, operand 0, single buffered']
    %7 = vsyncpa [#allocation3], 0
    %8 = vsyncpa [#allocation6], 0
    %9 = vsyncpa [#allocation4], 0
    // Predicated region
    $region2: #{tpu_custom_call.1} parent=1 // pred_check
      _
    $region3: #{tpu_custom_call.1} parent=1 // pred_check_branch
      %11 = sbr.rel (0) target = $region5
    $region4: #{tpu_custom_call.1} parent=1 // pred_region
      %13 = vsyncadd [#allocation3], 0
      %s14 = sshll.u32 %s0, 4
      %s15 = int_to_ptr.hbm [resolvable:$true] %s14
      %s16 = sshll.u32 [#allocation2], 4
      %s17 = int_to_ptr.vmem [resolvable:$true] %s16
      %22 = dma.hbm_to_vmem [thread:$0]  %s15, 64, %s17, [#allocation3], 16, 16, 1
    $region5: #{tpu_custom_call.1} parent=1 // pred_fallthru
      _
    // Predicated region
    $region6: #{tpu_custom_call.1} parent=1 // pred_check
      _
    $region7: #{tpu_custom_call.1} parent=1 // pred_check_branch
      %24 = sbr.rel (0) target = $region9
    $region8: #{tpu_custom_call.1} parent=1 // pred_region
      %26 = vsyncadd [#allocation6], 0
      %s27 = sshll.u32 %s1, 4
      %s28 = int_to_ptr.hbm [resolvable:$true] %s27
      %s29 = sshll.u32 [#allocation5], 4
      %s30 = int_to_ptr.vmem [resolvable:$true] %s29
      %35 = dma.hbm_to_vmem [thread:$0]  %s28, 32, %s30, [#allocation6], 16, 16, 1
    $region9: #{tpu_custom_call.1} parent=1 // pred_fallthru
      _
    // Predicated region
    $region10: #{tpu_custom_call.1} parent=1 // pred_check
      _
    $region11: #{tpu_custom_call.1} parent=1 // pred_check_branch
      %37 = sbr.rel (0) target = $region13
    $region12: #{tpu_custom_call.1} parent=1 // pred_region
      %39 = dma.done [#allocation3], 64
    $region13: #{tpu_custom_call.1} parent=1 // pred_fallthru
      _
    // Predicated region
    $region14: #{tpu_custom_call.1} parent=1 // pred_check
      _
    $region15: #{tpu_custom_call.1} parent=1 // pred_check_branch
      %41 = sbr.rel (0) target = $region17
    $region16: #{tpu_custom_call.1} parent=1 // pred_region
      %43 = dma.done [#allocation6], 32
    $region17: #{tpu_custom_call.1} parent=1 // pred_fallthru
      _
    %v44 = vld [vmem:[#allocation2] sm:$0x1]
    %s45 = scalar_lea.vmem [#allocation2], 1
    %v46 = vld [vmem:[%s45] sm:$0x1]
    %s47 = scalar_lea.vmem [#allocation2], 2
    %v48 = vld [vmem:[%s47] sm:$0x1]
    %s49 = scalar_lea.vmem [#allocation2], 3
    %v50 = vld [vmem:[%s49] sm:$0x1]
    %v51 = vld [vmem:[#allocation5] sm:$0x1]
    %s52 = scalar_lea.vmem [#allocation5], 1
    %v53 = vld [vmem:[%s52] sm:$0x1]
    %v54 = vand.u32 2147483647, %v48
    %vm55 = vcmp.le.f32.partialorder %v54, 0.7853982
    %vm56 = vcmp.lt.s32.totalorder %v48, 0
    %v57 = vand.u32 %v48, 2139095040
    %v58 = vshrl.u32 %v57, 23
    %v59 = vsub.s32 %v58, 127
    %v60 = vand.u32 2147483647, %v48
    %v61 = vand.u32 %v60, 8388607
    %v62 = vor.u32 %v61, 8388608
    %v63 = vsub.s32 0, %v62
    %v64 = vadd.s32 %v59, 1
    %vm65 = vcmp.gt.s32.totalorder %v64, 0
    %v66 = vsel %vm65, %v64, 0
    %v67 = vshrl.u32 %v66, 5
    %v68 = vand.u32 %v66, 31
    %v69 = vsub.s32 32, %v68
    %v70 = vshrl.u32 683565275, %v69
    %v71 = vshll.u32 683565275, %v68
    %v72 = vshrl.u32 2475754826, %v69
    %v73 = vor.u32 %v71, %v72
    %v74 = vshll.u32 2475754826, %v68
    %v75 = vshrl.u32 2131351028, %v69
    %v76 = vor.u32 %v74, %v75
    %v77 = vshll.u32 2131351028, %v68
    %v78 = vshrl.u32 2102212464, %v69
    %v79 = vor.u32 %v77, %v78
    %v80 = vshll.u32 2102212464, %v68
    %v81 = vshrl.u32 920167782, %v69
    %v82 = vor.u32 %v80, %v81
    %v83 = vshll.u32 920167782, %v68
    %v84 = vshrl.u32 1326507024, %v69
    %v85 = vor.u32 %v83, %v84
    %vm86 = vcmp.lt.s32.totalorder %v67, 1
    %vm87 = vcmp.lt.s32.totalorder %v67, 2
    %vm88 = vcmp.lt.s32.totalorder %v67, 3
    %vm89 = vcmp.lt.s32.totalorder %v67, 4
    %v90 = vsel %vm86, %v70, %v73
    %v91 = vsel %vm89, %v79, 2102212464
    %v92 = vsel %vm88, %v76, %v91
    %v93 = vsel %vm87, %v90, %v92
    %v94 = vsel %vm86, %v73, %v76
    %v95 = vsel %vm89, %v82, 920167782
    %v96 = vsel %vm88, %v79, %v95
    %v97 = vsel %vm87, %v94, %v96
    %v98 = vsel %vm86, %v76, %v79
    %v99 = vsel %vm89, %v85, 1326507024
    %v100 = vsel %vm88, %v82, %v99
    %v101 = vsel %vm87, %v98, %v100
    %v102 = vshll.u32 %v62, 8
    %v103 = vand.u32 %v102, 65535
    %v104 = vshrl.u32 %v102, 16
    %v105 = vand.u32 %v101, 65535
    %v106 = vshrl.u32 %v101, 16
    %v107 = vmul.u32 %v103, %v105
    %v108 = vmul.u32 %v103, %v106
    %v109 = vmul.u32 %v104, %v105
    %v110 = vmul.u32 %v104, %v106
    %v111 = vshll.u32 %v108, 16
    %v112 = vshrl.u32 %v108, 16
    %v113 = vshll.u32 %v109, 16
    %v114 = vshrl.u32 %v109, 16
    %vm115 = vc.u32 %v107, %v111
    %v116 = vsel %vm115, 1, 0
    %v117 = vadd.s32 %v107, %v111
    %v118 = vadd.s32 %v110, %v116
    %vm119 = vc.u32 %v117, %v113
    %v120 = vsel %vm119, 1, 0
    %v121 = vadd.s32 %v117, %v113
    %v122 = vadd.s32 %v118, %v120
    %v123 = vadd.s32 %v122, %v112
    %v124 = vadd.s32 %v123, %v114
    %v125 = vand.u32 %v102, 65535
    %v126 = vshrl.u32 %v102, 16
    %v127 = vand.u32 %v97, 65535
    %v128 = vshrl.u32 %v97, 16
    %v129 = vmul.u32 %v125, %v127
    %v130 = vmul.u32 %v125, %v128
    %v131 = vmul.u32 %v126, %v127
    %v132 = vmul.u32 %v126, %v128
    %v133 = vshll.u32 %v130, 16
    %v134 = vshrl.u32 %v130, 16
    %v135 = vshll.u32 %v131, 16
    %v136 = vshrl.u32 %v131, 16
    %vm137 = vc.u32 %v129, %v133
    %v138 = vsel %vm137, 1, 0
    %v139 = vadd.s32 %v129, %v133
    %v140 = vadd.s32 %v132, %v138
    %vm141 = vc.u32 %v139, %v135
    %v142 = vsel %vm141, 1, 0
    %v143 = vadd.s32 %v139, %v135
    %v144 = vadd.s32 %v140, %v142
    %v145 = vadd.s32 %v144, %v134
    %v146 = vadd.s32 %v145, %v136
    %v147 = vmul.u32 %v102, %v93
    %v148 = vadd.s32 %v124, %v143
    %vm149 = vc.u32 %v124, %v143
    %v150 = vadd.s32 %v146, 1
    %v151 = vsel %vm149, %v150, %v146
    %v152 = vadd.s32 %v147, %v151
    %v153 = vadd.s32 %v152, 536870912
    %v154 = vshrl.u32 %v153, 30
    %v155 = vshll.u32 %v154, 30
    %v156 = vsub.s32 %v152, %v155
    %vm157 = vcmp.lt.s32.totalorder %v156, 0
    %v158 = vsub.s32 0, %v156
    %v159 = vsel %vm157, %v158, %v156
    %v160 = vclz %v159
    %v161 = vsub.s32 %v160, 2
    %vm162 = vcmp.gt.s32.totalorder 0, %v161
    %v163 = vsel %vm162, 0, %v161
    %v164 = vsub.s32 32, %v163
    %v165 = vshll.u32 %v156, %v163
    %v166 = vshrl.u32 %v148, %v164
    %v167 = vor.u32 %v165, %v166
    %v168 = vsub.s32 4294967266, %v163
    %v169 = vadd.s32 %v168, 127
    %v170 = vshll.u32 %v169, 23
    %v171 = vor.u32 4788187, %v170
    %v172 = vand.u32 2147483647, %v171
    %v174 = vcvt.s32.f32 %v167
    %v175 = vmul.f32 %v174, %v172
    %v176 = vxor.u32 %v175, 2147483648
    %v177 = vsel %vm56, %v176, %v175
    %v178 = vsub.s32 4, %v154
    %v179 = vsel %vm56, %v178, %v154
    %v180 = vsel %vm55, %v48, %v177
    %v181 = vsel %vm55, 0, %v179
    %v182 = vmul.f32 %v180, %v180
    %v183 = vmul.f32 %v182, -0.001358992
    %v184 = vadd.f32 %v183, 0.041655596
    %v185 = vmul.f32 %v182, %v184
    %v186 = vadd.f32 %v185, -0.4999988
    %v187 = vmul.f32 %v182, %v186
    %v188 = vadd.f32 1.0, %v187
    %v189 = vmul.f32 %v180, %v180
    %v190 = vmul.f32 %v189, -0.00019511016
    %v191 = vadd.f32 %v190, 0.008332121
    %v192 = vmul.f32 %v189, %v191
    %v193 = vadd.f32 %v192, -0.16666654
    %v194 = vmul.f32 %v189, %v193
    %v195 = vadd.f32 %v194, 1.0
    %v196 = vmul.f32 %v195, %v180
    %vm197 = vweird.f32 %v48
    %v198 = vand.u32 %v181, 3
    %vm199 = vcmp.lt.s32.totalorder %v198, 2
    %vm200 = vcmp.eq.s32.totalorder %v198, 0
    %v201 = vxor.u32 %v196, 2147483648
    %v202 = vsel %vm200, %v188, %v201
    %vm203 = vcmp.eq.s32.totalorder %v198, 2
    %v204 = vxor.u32 %v188, 2147483648
    %v205 = vsel %vm203, %v204, %v196
    %v206 = vsel %vm199, %v202, %v205
    %v207 = vsel %vm197, nan, %v206
    %v208 = vmul.f32 %v50, %v207
    %v209 = vmul.f32 %v208, 0.1
    %v210 = vadd.f32 %v44, %v209
    %211 = vst [vmem:[#allocation7] sm:$0x1] %v210
    %v212 = vand.u32 2147483647, %v48
    %vm213 = vcmp.le.f32.partialorder %v212, 0.7853982
    %vm214 = vcmp.lt.s32.totalorder %v48, 0
    %v215 = vand.u32 %v48, 2139095040
    %v216 = vshrl.u32 %v215, 23
    %v217 = vsub.s32 %v216, 127
    %v218 = vand.u32 2147483647, %v48
    %v219 = vand.u32 %v218, 8388607
    %v220 = vor.u32 %v219, 8388608
    %v221 = vsub.s32 0, %v220
    %v222 = vadd.s32 %v217, 1
    %vm223 = vcmp.gt.s32.totalorder %v222, 0
    %v224 = vsel %vm223, %v222, 0
    %v225 = vshrl.u32 %v224, 5
    %v226 = vand.u32 %v224, 31
    %v227 = vsub.s32 32, %v226
    %v228 = vshrl.u32 683565275, %v227
    %v229 = vshll.u32 683565275, %v226
    %v230 = vshrl.u32 2475754826, %v227
    %v231 = vor.u32 %v229, %v230
    %v232 = vshll.u32 2475754826, %v226
    %v233 = vshrl.u32 2131351028, %v227
    %v234 = vor.u32 %v232, %v233
    %v235 = vshll.u32 2131351028, %v226
    %v236 = vshrl.u32 2102212464, %v227
    %v237 = vor.u32 %v235, %v236
    %v238 = vshll.u32 2102212464, %v226
    %v239 = vshrl.u32 920167782, %v227
    %v240 = vor.u32 %v238, %v239
    %v241 = vshll.u32 920167782, %v226
    %v242 = vshrl.u32 1326507024, %v227
    %v243 = vor.u32 %v241, %v242
    %vm244 = vcmp.lt.s32.totalorder %v225, 1
    %vm245 = vcmp.lt.s32.totalorder %v225, 2
    %vm246 = vcmp.lt.s32.totalorder %v225, 3
    %vm247 = vcmp.lt.s32.totalorder %v225, 4
    %v248 = vsel %vm244, %v228, %v231
    %v249 = vsel %vm247, %v237, 2102212464
    %v250 = vsel %vm246, %v234, %v249
    %v251 = vsel %vm245, %v248, %v250
    %v252 = vsel %vm244, %v231, %v234
    %v253 = vsel %vm247, %v240, 920167782
    %v254 = vsel %vm246, %v237, %v253
    %v255 = vsel %vm245, %v252, %v254
    %v256 = vsel %vm244, %v234, %v237
    %v257 = vsel %vm247, %v243, 1326507024
    %v258 = vsel %vm246, %v240, %v257
    %v259 = vsel %vm245, %v256, %v258
    %v260 = vshll.u32 %v220, 8
    %v261 = vand.u32 %v260, 65535
    %v262 = vshrl.u32 %v260, 16
    %v263 = vand.u32 %v259, 65535
    %v264 = vshrl.u32 %v259, 16
    %v265 = vmul.u32 %v261, %v263
    %v266 = vmul.u32 %v261, %v264
    %v267 = vmul.u32 %v262, %v263
    %v268 = vmul.u32 %v262, %v264
    %v269 = vshll.u32 %v266, 16
    %v270 = vshrl.u32 %v266, 16
    %v271 = vshll.u32 %v267, 16
    %v272 = vshrl.u32 %v267, 16
    %vm273 = vc.u32 %v265, %v269
    %v274 = vsel %vm273, 1, 0
    %v275 = vadd.s32 %v265, %v269
    %v276 = vadd.s32 %v268, %v274
    %vm277 = vc.u32 %v275, %v271
    %v278 = vsel %vm277, 1, 0
    %v279 = vadd.s32 %v275, %v271
    %v280 = vadd.s32 %v276, %v278
    %v281 = vadd.s32 %v280, %v270
    %v282 = vadd.s32 %v281, %v272
    %v283 = vand.u32 %v260, 65535
    %v284 = vshrl.u32 %v260, 16
    %v285 = vand.u32 %v255, 65535
    %v286 = vshrl.u32 %v255, 16
    %v287 = vmul.u32 %v283, %v285
    %v288 = vmul.u32 %v283, %v286
    %v289 = vmul.u32 %v284, %v285
    %v290 = vmul.u32 %v284, %v286
    %v291 = vshll.u32 %v288, 16
    %v292 = vshrl.u32 %v288, 16
    %v293 = vshll.u32 %v289, 16
    %v294 = vshrl.u32 %v289, 16
    %vm295 = vc.u32 %v287, %v291
    %v296 = vsel %vm295, 1, 0
    %v297 = vadd.s32 %v287, %v291
    %v298 = vadd.s32 %v290, %v296
    %vm299 = vc.u32 %v297, %v293
    %v300 = vsel %vm299, 1, 0
    %v301 = vadd.s32 %v297, %v293
    %v302 = vadd.s32 %v298, %v300
    %v303 = vadd.s32 %v302, %v292
    %v304 = vadd.s32 %v303, %v294
    %v305 = vmul.u32 %v260, %v251
    %v306 = vadd.s32 %v282, %v301
    %vm307 = vc.u32 %v282, %v301
    %v308 = vadd.s32 %v304, 1
    %v309 = vsel %vm307, %v308, %v304
    %v310 = vadd.s32 %v305, %v309
    %v311 = vadd.s32 %v310, 536870912
    %v312 = vshrl.u32 %v311, 30
    %v313 = vshll.u32 %v312, 30
    %v314 = vsub.s32 %v310, %v313
    %vm315 = vcmp.lt.s32.totalorder %v314, 0
    %v316 = vsub.s32 0, %v314
    %v317 = vsel %vm315, %v316, %v314
    %v318 = vclz %v317
    %v319 = vsub.s32 %v318, 2
    %vm320 = vcmp.gt.s32.totalorder 0, %v319
    %v321 = vsel %vm320, 0, %v319
    %v322 = vsub.s32 32, %v321
    %v323 = vshll.u32 %v314, %v321
    %v324 = vshrl.u32 %v306, %v322
    %v325 = vor.u32 %v323, %v324
    %v326 = vsub.s32 4294967266, %v321
    %v327 = vadd.s32 %v326, 127
    %v328 = vshll.u32 %v327, 23
    %v329 = vor.u32 4788187, %v328
    %v330 = vand.u32 2147483647, %v329
    %v332 = vcvt.s32.f32 %v325
    %v333 = vmul.f32 %v332, %v330
    %v334 = vxor.u32 %v333, 2147483648
    %v335 = vsel %vm214, %v334, %v333
    %v336 = vsub.s32 4, %v312
    %v337 = vsel %vm214, %v336, %v312
    %v338 = vsel %vm213, %v48, %v335
    %v339 = vsel %vm213, 0, %v337
    %v340 = vmul.f32 %v338, %v338
    %v341 = vmul.f32 %v340, -0.001358992
    %v342 = vadd.f32 %v341, 0.041655596
    %v343 = vmul.f32 %v340, %v342
    %v344 = vadd.f32 %v343, -0.4999988
    %v345 = vmul.f32 %v340, %v344
    %v346 = vadd.f32 1.0, %v345
    %v347 = vmul.f32 %v338, %v338
    %v348 = vmul.f32 %v347, -0.00019511016
    %v349 = vadd.f32 %v348, 0.008332121
    %v350 = vmul.f32 %v347, %v349
    %v351 = vadd.f32 %v350, -0.16666654
    %v352 = vmul.f32 %v347, %v351
    %v353 = vadd.f32 %v352, 1.0
    %v354 = vmul.f32 %v353, %v338
    %vm355 = vweird.f32 %v48
    %v356 = vadd.s32 %v339, 3
    %v357 = vand.u32 %v356, 3
    %vm358 = vcmp.lt.s32.totalorder %v357, 2
    %vm359 = vcmp.eq.s32.totalorder %v357, 0
    %v360 = vxor.u32 %v354, 2147483648
    %v361 = vsel %vm359, %v346, %v360
    %vm362 = vcmp.eq.s32.totalorder %v357, 2
    %v363 = vxor.u32 %v346, 2147483648
    %v364 = vsel %vm362, %v363, %v354
    %v365 = vsel %vm358, %v361, %v364
    %v366 = vsel %vm355, nan, %v365
    %v367 = vmul.f32 %v50, %v366
    %v368 = vmul.f32 %v367, 0.1
    %v369 = vadd.f32 %v46, %v368
    %s370 = scalar_lea.vmem [#allocation7], 1
    %371 = vst [vmem:[%s370] sm:$0x1] %v369
    %v372 = vand.u32 2147483647, %v53
    %vm373 = vcmp.le.f32.partialorder %v372, 0.7853982
    %vm374 = vcmp.lt.s32.totalorder %v53, 0
    %v375 = vand.u32 %v53, 2139095040
    %v376 = vshrl.u32 %v375, 23
    %v377 = vsub.s32 %v376, 127
    %v378 = vand.u32 2147483647, %v53
    %v379 = vand.u32 %v378, 8388607
    %v380 = vor.u32 %v379, 8388608
    %v381 = vsub.s32 0, %v380
    %v382 = vadd.s32 %v377, 1
    %vm383 = vcmp.gt.s32.totalorder %v382, 0
    %v384 = vsel %vm383, %v382, 0
    %v385 = vshrl.u32 %v384, 5
    %v386 = vand.u32 %v384, 31
    %v387 = vsub.s32 32, %v386
    %v388 = vshrl.u32 683565275, %v387
    %v389 = vshll.u32 683565275, %v386
    %v390 = vshrl.u32 2475754826, %v387
    %v391 = vor.u32 %v389, %v390
    %v392 = vshll.u32 2475754826, %v386
    %v393 = vshrl.u32 2131351028, %v387
    %v394 = vor.u32 %v392, %v393
    %v395 = vshll.u32 2131351028, %v386
    %v396 = vshrl.u32 2102212464, %v387
    %v397 = vor.u32 %v395, %v396
    %v398 = vshll.u32 2102212464, %v386
    %v399 = vshrl.u32 920167782, %v387
    %v400 = vor.u32 %v398, %v399
    %v401 = vshll.u32 920167782, %v386
    %v402 = vshrl.u32 1326507024, %v387
    %v403 = vor.u32 %v401, %v402
    %vm404 = vcmp.lt.s32.totalorder %v385, 1
    %vm405 = vcmp.lt.s32.totalorder %v385, 2
    %vm406 = vcmp.lt.s32.totalorder %v385, 3
    %vm407 = vcmp.lt.s32.totalorder %v385, 4
    %v408 = vsel %vm404, %v388, %v391
    %v409 = vsel %vm407, %v397, 2102212464
    %v410 = vsel %vm406, %v394, %v409
    %v411 = vsel %vm405, %v408, %v410
    %v412 = vsel %vm404, %v391, %v394
    %v413 = vsel %vm407, %v400, 920167782
    %v414 = vsel %vm406, %v397, %v413
    %v415 = vsel %vm405, %v412, %v414
    %v416 = vsel %vm404, %v394, %v397
    %v417 = vsel %vm407, %v403, 1326507024
    %v418 = vsel %vm406, %v400, %v417
    %v419 = vsel %vm405, %v416, %v418
    %v420 = vshll.u32 %v380, 8
    %v421 = vand.u32 %v420, 65535
    %v422 = vshrl.u32 %v420, 16
    %v423 = vand.u32 %v419, 65535
    %v424 = vshrl.u32 %v419, 16
    %v425 = vmul.u32 %v421, %v423
    %v426 = vmul.u32 %v421, %v424
    %v427 = vmul.u32 %v422, %v423
    %v428 = vmul.u32 %v422, %v424
    %v429 = vshll.u32 %v426, 16
    %v430 = vshrl.u32 %v426, 16
    %v431 = vshll.u32 %v427, 16
    %v432 = vshrl.u32 %v427, 16
    %vm433 = vc.u32 %v425, %v429
    %v434 = vsel %vm433, 1, 0
    %v435 = vadd.s32 %v425, %v429
    %v436 = vadd.s32 %v428, %v434
    %vm437 = vc.u32 %v435, %v431
    %v438 = vsel %vm437, 1, 0
    %v439 = vadd.s32 %v435, %v431
    %v440 = vadd.s32 %v436, %v438
    %v441 = vadd.s32 %v440, %v430
    %v442 = vadd.s32 %v441, %v432
    %v443 = vand.u32 %v420, 65535
    %v444 = vshrl.u32 %v420, 16
    %v445 = vand.u32 %v415, 65535
    %v446 = vshrl.u32 %v415, 16
    %v447 = vmul.u32 %v443, %v445
    %v448 = vmul.u32 %v443, %v446
    %v449 = vmul.u32 %v444, %v445
    %v450 = vmul.u32 %v444, %v446
    %v451 = vshll.u32 %v448, 16
    %v452 = vshrl.u32 %v448, 16
    %v453 = vshll.u32 %v449, 16
    %v454 = vshrl.u32 %v449, 16
    %vm455 = vc.u32 %v447, %v451
    %v456 = vsel %vm455, 1, 0
    %v457 = vadd.s32 %v447, %v451
    %v458 = vadd.s32 %v450, %v456
    %vm459 = vc.u32 %v457, %v453
    %v460 = vsel %vm459, 1, 0
    %v461 = vadd.s32 %v457, %v453
    %v462 = vadd.s32 %v458, %v460
    %v463 = vadd.s32 %v462, %v452
    %v464 = vadd.s32 %v463, %v454
    %v465 = vmul.u32 %v420, %v411
    %v466 = vadd.s32 %v442, %v461
    %vm467 = vc.u32 %v442, %v461
    %v468 = vadd.s32 %v464, 1
    %v469 = vsel %vm467, %v468, %v464
    %v470 = vadd.s32 %v465, %v469
    %v471 = vadd.s32 %v470, 536870912
    %v472 = vshrl.u32 %v471, 30
    %v473 = vshll.u32 %v472, 30
    %v474 = vsub.s32 %v470, %v473
    %vm475 = vcmp.lt.s32.totalorder %v474, 0
    %v476 = vsub.s32 0, %v474
    %v477 = vsel %vm475, %v476, %v474
    %v478 = vclz %v477
    %v479 = vsub.s32 %v478, 2
    %vm480 = vcmp.gt.s32.totalorder 0, %v479
    %v481 = vsel %vm480, 0, %v479
    %v482 = vsub.s32 32, %v481
    %v483 = vshll.u32 %v474, %v481
    %v484 = vshrl.u32 %v466, %v482
    %v485 = vor.u32 %v483, %v484
    %v486 = vsub.s32 4294967266, %v481
    %v487 = vadd.s32 %v486, 127
    %v488 = vshll.u32 %v487, 23
    %v489 = vor.u32 4788187, %v488
    %v490 = vand.u32 2147483647, %v489
    %v492 = vcvt.s32.f32 %v485
    %v493 = vmul.f32 %v492, %v490
    %v494 = vxor.u32 %v493, 2147483648
    %v495 = vsel %vm374, %v494, %v493
    %v496 = vsub.s32 4, %v472
    %v497 = vsel %vm374, %v496, %v472
    %v498 = vsel %vm373, %v53, %v495
    %v499 = vsel %vm373, 0, %v497
    %v500 = vmul.f32 %v498, %v498
    %v501 = vmul.f32 %v500, -0.001358992
    %v502 = vadd.f32 %v501, 0.041655596
    %v503 = vmul.f32 %v500, %v502
    %v504 = vadd.f32 %v503, -0.4999988
    %v505 = vmul.f32 %v500, %v504
    %v506 = vadd.f32 1.0, %v505
    %v507 = vmul.f32 %v498, %v498
    %v508 = vmul.f32 %v507, -0.00019511016
    %v509 = vadd.f32 %v508, 0.008332121
    %v510 = vmul.f32 %v507, %v509
    %v511 = vadd.f32 %v510, -0.16666654
    %v512 = vmul.f32 %v507, %v511
    %v513 = vadd.f32 %v512, 1.0
    %v514 = vmul.f32 %v513, %v498
    %vm515 = vweird.f32 %v53
    %v516 = vand.u32 %v499, 3
    %v517 = vadd.s32 %v499, 3
    %v518 = vand.u32 %v517, 3
    %vm519 = vcmp.lt.s32.totalorder %v516, 2
    %vm520 = vcmp.eq.s32.totalorder %v516, 0
    %v521 = vxor.u32 %v514, 2147483648
    %v522 = vsel %vm520, %v506, %v521
    %vm523 = vcmp.eq.s32.totalorder %v516, 2
    %v524 = vxor.u32 %v506, 2147483648
    %v525 = vsel %vm523, %v524, %v514
    %v526 = vsel %vm519, %v522, %v525
    %vm527 = vcmp.lt.s32.totalorder %v518, 2
    %vm528 = vcmp.eq.s32.totalorder %v518, 0
    %v529 = vxor.u32 %v514, 2147483648
    %v530 = vsel %vm528, %v506, %v529
    %vm531 = vcmp.eq.s32.totalorder %v518, 2
    %v532 = vxor.u32 %v506, 2147483648
    %v533 = vsel %vm531, %v532, %v514
    %v534 = vsel %vm527, %v530, %v533
    %v535 = vrcp.pop %v526
    %v536 = vmul.f32 %v526, %v535
    %v537 = vsub.f32 1.0, %v536
    %v538 = vmul.f32 %v535, %v537
    %v539 = vadd.f32 %v535, %v538
    %vm540 = vweird.f32 %v526
    %vm541 = vweird.f32 %v535
    %vm542 = vmor %vm540, %vm541
    %v543 = vsel %vm542, %v535, %v539
    %v544 = vand.u32 2147483647, %v526
    %vm545 = vcmp.eq.f32.partialorder %v544, 8.507059e+37
    %v546 = vand.u32 %v526, 2147483648
    %v547 = vor.u32 1.1754944e-38, %v546
    %v548 = vsel %vm545, %v547, %v543
    %v549 = vmul.f32 %v534, %v548
    %v550 = vsel %vm515, nan, %v549
    %v551 = vmul.f32 %v50, %v550
    %v552 = vmul.f32 %v551, 0.04
    %v553 = vadd.f32 %v48, %v552
    %s554 = scalar_lea.vmem [#allocation7], 2
    %555 = vst [vmem:[%s554] sm:$0x1] %v553
    %v556 = vmul.f32 %v51, 0.1
    %v557 = vadd.f32 %v50, %v556
    %s558 = scalar_lea.vmem [#allocation7], 3
    %559 = vst [vmem:[%s558] sm:$0x1] %v557
    // Predicated region
    $region18: #{tpu_custom_call.1} parent=1 // pred_check
      _
    $region19: #{tpu_custom_call.1} parent=1 // pred_check_branch
      %561 = sbr.rel (0) target = $region21
    $region20: #{tpu_custom_call.1} parent=1 // pred_region
      %563 = vsyncadd [#allocation4], 0
      %s564 = sshll.u32 [#allocation7], 4
      %s565 = int_to_ptr.vmem [resolvable:$true] %s564
      %s566 = sshll.u32 %s2, 4
      %s567 = int_to_ptr.hbm [resolvable:$true] %s566
      %572 = dma.vmem_to_hbm [thread:$0]  %s565, 64, %s567, [#allocation4], 16, 16, 1
    $region21: #{tpu_custom_call.1} parent=1 // pred_fallthru
      _
    // Predicated region
    $region22: #{tpu_custom_call.1} parent=1 // pred_check
      _
    $region23: #{tpu_custom_call.1} parent=1 // pred_check_branch
      %574 = sbr.rel (0) target = $region25
    $region24: #{tpu_custom_call.1} parent=1 // pred_region
      %576 = dma.done [#allocation4], 64
    $region25: #{tpu_custom_call.1} parent=1 // pred_fallthru
      _
    %577 = vsyncpa [#allocation3], 1
    %578 = vsyncpa [#allocation6], 1
    %579 = vsyncpa [#allocation4], 1

</llo_original>
